<compile_context>
chip_gen: v5e
topology: v5e:2x2
jax: 0.10.0
libtpu: 0.0.40
codegen_flags: <defaults>
</compile_context>

<pallas_src>
import functools

import jax
import jax.numpy as jnp
from jax.experimental import pallas as pl
from jax.experimental.pallas import tpu as pltpu

_G = 8          # original rows packed per lane-dense row (8 * D=16 -> 128 lanes)
_TMG_MAX = 2048 # max packed rows per grid step (= 16384 original rows)


def fused_kernel(x_ref, wp_ref, bp_ref, m2_ref, o_ref):
    """Two MXU dots: t = xg @ Wp + bp;  out = pass(t) + relu(relu_part(t)) @ M2."""
    gh = m2_ref.shape[0]                                     # G*H (lane-tile aligned split)
    t = jnp.dot(x_ref[...], wp_ref[...],
                preferred_element_type=jnp.float32) + bp_ref[...]
    h = jnp.maximum(t[:, :gh], 0.0)
    out = t[:, gh:] + jnp.dot(h, m2_ref[...], preferred_element_type=jnp.float32)
    o_ref[...] = out.astype(o_ref.dtype)


@functools.partial(jax.jit, static_argnames=("tile_g",))
def three_operation_model(x, w1, b1, w2, b2, cw, cb, wc, bc, *, tile_g=None):
    B, D = x.shape
    H = w1.shape[1]
    O = wc.shape[1]
    G = _G

    # ---- fold op1 + op3 (both linear in x) with their combination slices ----
    # Conv1d(1,H,3,pad=1) followed by mean(dim=2) is linear:  out3 = x @ C + cb,
    #   C[j,h] = (cw0+cw1+cw2)[h]/D - (j==0)*cw2[h]/D - (j==D-1)*cw0[h]/D
    inv_d = 1.0 / D
    C = jnp.broadcast_to((cw[0] + cw[1] + cw[2]) * inv_d, (D, H))
    C = C.at[0].add(-cw[2] * inv_d)
    C = C.at[D - 1].add(-cw[0] * inv_d)
    w_eff = w1 @ wc[:H] + C @ wc[2 * H:]                     # (D, O)
    b_eff = bc + b1 @ wc[:H] + cb @ wc[2 * H:]               # (1, O)

    # ---- block-diagonal packed weights for the lane-dense formulation ----
    eye_g = jnp.eye(G, dtype=x.dtype)
    wp = jnp.concatenate([jnp.kron(eye_g, w2),               # relu branch, (G*D, G*H)
                          jnp.kron(eye_g, w_eff)], axis=1)   # pass branch -> (G*D, G*(H+O))
    bp = jnp.concatenate([jnp.tile(b2, (1, G)),
                          jnp.tile(b_eff, (1, G))], axis=1)  # (1, G*(H+O))
    m2 = jnp.kron(eye_g, wc[H:2 * H])                        # (G*H, G*O)

    GD, GW = wp.shape
    GH, GO = m2.shape

    # ---- lane-dense repack of x: (B, D) -> (Bg, G*D); row-major reshape is free ----
    Bp = pl.cdiv(B, G) * G
    if Bp != B:              # at most G-1 padded rows, only when B % G != 0
        x = jnp.pad(x, ((0, Bp - B), (0, 0)))
    Bg = Bp // G
    xg = x.reshape(Bg, GD)

    # ---- batch tiling over packed rows ----
    cap = _TMG_MAX if tile_g is None else tile_g
    if Bg <= 16:
        tmg = Bg                                             # single block == full extent
    else:
        tmg = min(cap, pl.cdiv(pl.cdiv(Bg, 2), 8) * 8)       # >=2 steps, multiple of 8
    grid = (pl.cdiv(Bg, tmg),)                               # ragged last block -> masked

    flops = 2 * Bg * GD * GW + 2 * Bg * GH * GO
    bytes_accessed = 4 * (Bg * (GD + GO) + GD * GW + GW + GH * GO)

    out = pl.pallas_call(
        fused_kernel,
        out_shape=jax.ShapeDtypeStruct((Bg, GO), jnp.float32),
        grid_spec=pltpu.PrefetchScalarGridSpec(
            num_scalar_prefetch=0,
            grid=grid,
            in_specs=[
                pl.BlockSpec((tmg, GD), lambda i: (i, 0)),   # packed x tile (128 lanes dense)
                pl.BlockSpec((GD, GW), lambda i: (0, 0)),    # packed weight (VMEM-resident)
                pl.BlockSpec((1, GW), lambda i: (0, 0)),     # packed bias   (resident)
                pl.BlockSpec((GH, GO), lambda i: (0, 0)),    # block-diag wc2 (resident)
            ],
            out_specs=pl.BlockSpec((tmg, GO), lambda i: (i, 0)),
        ),
        compiler_params=pltpu.CompilerParams(
            dimension_semantics=("parallel",)),              # megacore / 2-TC sharding on v7x
        cost_estimate=pl.CostEstimate(
            flops=flops, transcendentals=0, bytes_accessed=bytes_accessed),
    )(xg, wp, bp, m2)

    # free row-major unpack back to (B, O); trims both the <=7-row pad and nothing else
    return out.reshape(Bp, O)[:B]


def reference_forward(x, w1, b1, w2, b2, cw, cb, wc, bc):
    """Pure-JAX reference mirroring the PyTorch forward (explicit conv + mean)."""
    out1 = x @ w1 + b1
    out2 = jax.nn.relu(x @ w2 + b2)
    D = x.shape[1]
    xpad = jnp.pad(x, ((0, 0), (1, 1)))                      # padding=1
    conv = sum(xpad[:, k:k + D, None] * cw[k][None, None, :] for k in range(3))
    out3 = conv.mean(axis=1) + cb                            # (B, H)
    cat = jnp.concatenate([out1, out2, out3], axis=-1)
    return cat @ wc + bc


if __name__ == "__main__":
    D, H, O = 16, 32, 8   # input_dim, hidden_dim, output_dim

    key = jax.random.PRNGKey(0)
    ks = jax.random.split(key, 12)
    scale = 0.1
    w1 = jax.random.normal(ks[1], (D, H), jnp.float32) * scale   # op1 weight (in, out)
    b1 = jax.random.normal(ks[2], (1, H), jnp.float32) * scale
    w2 = jax.random.normal(ks[3], (D, H), jnp.float32) * scale   # op2 weight (in, out)
    b2 = jax.random.normal(ks[4], (1, H), jnp.float32) * scale
    cw = jax.random.normal(ks[5], (3, H), jnp.float32) * scale   # conv weight (k, out_ch)
    cb = jax.random.normal(ks[6], (1, H), jnp.float32) * scale
    wc = jax.random.normal(ks[7], (3 * H, O), jnp.float32) * scale
    bc = jax.random.normal(ks[8], (1, O), jnp.float32) * scale
    params = (w1, b1, w2, b2, cw, cb, wc, bc)

    # Small batch (B=2): exercises the B % 8 != 0 row-pad + single-block path.
    x_small = jax.random.normal(ks[0], (2, D), jnp.float32)
    out_small = jax.block_until_ready(three_operation_model(x_small, *params))
    ref_small = reference_forward(x_small, *params)
    assert out_small.shape == (2, O)
    assert jnp.allclose(out_small, ref_small, atol=1e-5, rtol=1e-5), (out_small, ref_small)

    # Larger batch with a small tile override: multi-step grid + ragged last block.
    x_big = jax.random.normal(ks[9], (600, D), jnp.float32)
    out_big = jax.block_until_ready(three_operation_model(x_big, *params, tile_g=32))
    ref_big = reference_forward(x_big, *params)
    assert out_big.shape == (600, O)
    assert jnp.allclose(out_big, ref_big, atol=1e-5, rtol=1e-5)

    # Odd batch (B=13): non-multiple-of-8 rows, default tile path.
    x_odd = jax.random.normal(ks[10], (13, D), jnp.float32)
    out_odd = jax.block_until_ready(three_operation_model(x_odd, *params))
    ref_odd = reference_forward(x_odd, *params)
    assert out_odd.shape == (13, O)
    assert jnp.allclose(out_odd, ref_odd, atol=1e-5, rtol=1e-5)

    print("KERNEL_OK")
</pallas_src>

<mosaic_0001>
module attributes {stable_mosaic.version = 11 : i64} {
  func.func @fused_kernel(%arg0: i32, %arg1: memref<1x128xf32, #tpu.memory_space<vmem>>, %arg2: memref<128x320xf32, #tpu.memory_space<vmem>>, %arg3: memref<1x320xf32, #tpu.memory_space<vmem>>, %arg4: memref<256x64xf32, #tpu.memory_space<vmem>>, %arg5: memref<1x64xf32, #tpu.memory_space<vmem>>) attributes {dimension_semantics = [#tpu.dimension_semantics<parallel>], iteration_bounds = array<i64: 1>, scalar_prefetch = 0 : i64, scratch_operands = 0 : i64, tpu.core_type = #tpu.core_type<tc>, window_params = [{transform_indices = @transform_0, window_bounds = array<i64: 1, 128>}, {pipeline_mode = #tpu.pipeline_mode<synchronous>, transform_indices = @transform_1, window_bounds = array<i64: 128, 320>}, {pipeline_mode = #tpu.pipeline_mode<synchronous>, transform_indices = @transform_2, window_bounds = array<i64: 1, 320>}, {pipeline_mode = #tpu.pipeline_mode<synchronous>, transform_indices = @transform_3, window_bounds = array<i64: 256, 64>}, {transform_indices = @transform_4, window_bounds = array<i64: 1, 64>}]} {
    %c0 = arith.constant 0 : index
    %c0_0 = arith.constant 0 : index
    %0 = vector.load %arg1[%c0, %c0_0] : memref<1x128xf32, #tpu.memory_space<vmem>>, vector<1x128xf32>
    %c0_1 = arith.constant 0 : index
    %c0_2 = arith.constant 0 : index
    %1 = vector.load %arg2[%c0_1, %c0_2] : memref<128x320xf32, #tpu.memory_space<vmem>>, vector<128x320xf32>
    %cst = arith.constant dense<0.000000e+00> : vector<1x320xf32>
    %2 = tpu.matmul %0, %1, %cst {dimension_numbers = #tpu.dot_dimension_numbers<[1], [0], [0], [1], [0, 0, 1, 1], [], []>} : vector<1x128xf32>, vector<128x320xf32>, vector<1x320xf32> -> vector<1x320xf32>
    %c0_3 = arith.constant 0 : index
    %c0_4 = arith.constant 0 : index
    %3 = vector.load %arg3[%c0_3, %c0_4] : memref<1x320xf32, #tpu.memory_space<vmem>>, vector<1x320xf32>
    %4 = arith.addf %2, %3 : vector<1x320xf32>
    %5 = vector.extract_strided_slice %4 {offsets = [0, 0], sizes = [1, 256], strides = [1, 1]} : vector<1x320xf32> to vector<1x256xf32>
    %cst_5 = arith.constant 0.000000e+00 : f32
    %6 = vector.broadcast %cst_5 : f32 to vector<1x256xf32>
    %7 = arith.maximumf %5, %6 : vector<1x256xf32>
    %8 = vector.extract_strided_slice %4 {offsets = [0, 256], sizes = [1, 64], strides = [1, 1]} : vector<1x320xf32> to vector<1x64xf32>
    %c0_6 = arith.constant 0 : index
    %c0_7 = arith.constant 0 : index
    %9 = vector.load %arg4[%c0_6, %c0_7] : memref<256x64xf32, #tpu.memory_space<vmem>>, vector<256x64xf32>
    %cst_8 = arith.constant dense<0.000000e+00> : vector<1x64xf32>
    %10 = tpu.matmul %7, %9, %cst_8 {dimension_numbers = #tpu.dot_dimension_numbers<[1], [0], [0], [1], [0, 0, 1, 1], [], []>} : vector<1x256xf32>, vector<256x64xf32>, vector<1x64xf32> -> vector<1x64xf32>
    %11 = arith.addf %8, %10 : vector<1x64xf32>
    %c0_9 = arith.constant 0 : index
    %c0_10 = arith.constant 0 : index
    %12 = vector.load %arg5[%c0_9, %c0_10] : memref<1x64xf32, #tpu.memory_space<vmem>>, vector<1x64xf32>
    tpu.vector_store %arg5[%c0_9, %c0_10], %11 {strides = array<i32>} : memref<1x64xf32, #tpu.memory_space<vmem>>, vector<1x64xf32>,
    return
  }
  func.func @transform_0(%arg0: i32) -> (i32, i32) {
    %c0_i32 = arith.constant 0 : i32
    %c0_i32_0 = arith.constant 0 : i32
    return %arg0, %c0_i32 : i32, i32
  }
  func.func @transform_1(%arg0: i32) -> (i32, i32) {
    %c0_i32 = arith.constant 0 : i32
    %c0_i32_0 = arith.constant 0 : i32
    %c0_i32_1 = arith.constant 0 : i32
    return %c0_i32, %c0_i32_0 : i32, i32
  }
  func.func @transform_2(%arg0: i32) -> (i32, i32) {
    %c0_i32 = arith.constant 0 : i32
    %c0_i32_0 = arith.constant 0 : i32
    %c0_i32_1 = arith.constant 0 : i32
    return %c0_i32, %c0_i32_0 : i32, i32
  }
  func.func @transform_3(%arg0: i32) -> (i32, i32) {
    %c0_i32 = arith.constant 0 : i32
    %c0_i32_0 = arith.constant 0 : i32
    %c0_i32_1 = arith.constant 0 : i32
    return %c0_i32, %c0_i32_0 : i32, i32
  }
  func.func @transform_4(%arg0: i32) -> (i32, i32) {
    %c0_i32 = arith.constant 0 : i32
    %c0_i32_0 = arith.constant 0 : i32
    return %arg0, %c0_i32 : i32, i32
  }
}

</mosaic_0001>

<llo_original>
// kernel: three_operation_model.1
$region0: #{three_operation_model.1}
  #allocation0 [shape = 'u32[]', space=smem, size = 0x4, offset = 0x4, fixed_abs, tag = 'smem constant byte address 0x4 - core index']
  #allocation1 [shape = 'u32[72,128]{1,0:T(1,128)}', space=vmem, size = 0x9000, scoped, tag = 'internal scratch']
  %s0 = inlined_call_operand.vmem [shape: f32[1,128], index: 0, kind: input, shape index: {}]
  %s1 = inlined_call_operand.vmem [shape: f32[128,320], index: 1, kind: input, shape index: {}]
  %s2 = inlined_call_operand.vmem [shape: f32[1,320], index: 2, kind: input, shape index: {}]
  %s3 = inlined_call_operand.vmem [shape: f32[256,64], index: 3, kind: input, shape index: {}]
  %s4 = inlined_call_operand.vmem [shape: f32[1,64], index: 4, kind: output, shape index: {}]
  %s5 = sld [smem:[#allocation0]]
  $region26: #{three_operation_model.1} parent=0
    _
  %s7 = ssub.s32 1, %s5
  %s8 = scalar_select 0, %s7, %s5
  // Predicated region
  $region2: #{three_operation_model.1} parent=0 // pred_check
    _
  $region3: #{three_operation_model.1} parent=0 // pred_check_branch
    %10 = sbr.rel (0) target = $region5
  $region4: #{three_operation_model.1} parent=0 // pred_region
    _
  $region5: #{three_operation_model.1} parent=0 // pred_fallthru
    _
  // Predicated region
  $region6: #{three_operation_model.1} parent=0 // pred_check
    _
  $region7: #{three_operation_model.1} parent=0 // pred_check_branch
    %12 = sbr.rel (0) target = $region9
  $region8: #{three_operation_model.1} parent=0 // pred_region
    _
  $region9: #{three_operation_model.1} parent=0 // pred_fallthru
    _
  // Predicated region
  $region10: #{three_operation_model.1} parent=0 // pred_check
    _
  $region11: #{three_operation_model.1} parent=0 // pred_check_branch
    %14 = sbr.rel (0) target = $region13
  $region12: #{three_operation_model.1} parent=0 // pred_region
    _
  $region13: #{three_operation_model.1} parent=0 // pred_fallthru
    _
  // Predicated region
  $region14: #{three_operation_model.1} parent=0 // pred_check
    _
  $region15: #{three_operation_model.1} parent=0 // pred_check_branch
    %16 = sbr.rel (0) target = $region17
  $region16: #{three_operation_model.1} parent=0 // pred_region
    _
  $region17: #{three_operation_model.1} parent=0 // pred_fallthru
    _
  %v17 = vld [vmem:[%s0] sm:$0x1]
  %v18 = vld [vmem:[%s1] sm:$0xff]
  %v19 = vld [vmem:[%s1 + $0x8] sm:$0xff]
  %v20 = vld [vmem:[%s1 + $0x10] sm:$0xff]
  %v21 = vld [vmem:[%s1 + $0x18] sm:$0xff]
  %v22 = vld [vmem:[%s1 + $0x20] sm:$0xff]
  %v23 = vld [vmem:[%s1 + $0x28] sm:$0xff]
  %v24 = vld [vmem:[%s1 + $0x30] sm:$0xff]
  %v25 = vld [vmem:[%s1 + $0x38] sm:$0xff]
  %v26 = vld [vmem:[%s1 + $0x40] sm:$0xff]
  %v27 = vld [vmem:[%s1 + $0x48] sm:$0xff]
  %v28 = vld [vmem:[%s1 + $0x50] sm:$0xff]
  %v29 = vld [vmem:[%s1 + $0x58] sm:$0xff]
  %v30 = vld [vmem:[%s1 + $0x60] sm:$0xff]
  %v31 = vld [vmem:[%s1 + $0x68] sm:$0xff]
  %v32 = vld [vmem:[%s1 + $0x70] sm:$0xff]
  %v33 = vld [vmem:[%s1 + $0x78] sm:$0xff]
  %v34 = vld [vmem:[%s1 + $0x80] sm:$0xff]
  %v35 = vld [vmem:[%s1 + $0x88] sm:$0xff]
  %v36 = vld [vmem:[%s1 + $0x90] sm:$0xff]
  %v37 = vld [vmem:[%s1 + $0x98] sm:$0xff]
  %v38 = vld [vmem:[%s1 + $0xa0] sm:$0xff]
  %v39 = vld [vmem:[%s1 + $0xa8] sm:$0xff]
  %v40 = vld [vmem:[%s1 + $0xb0] sm:$0xff]
  %v41 = vld [vmem:[%s1 + $0xb8] sm:$0xff]
  %v42 = vld [vmem:[%s1 + $0xc0] sm:$0xff]
  %v43 = vld [vmem:[%s1 + $0xc8] sm:$0xff]
  %v44 = vld [vmem:[%s1 + $0xd0] sm:$0xff]
  %v45 = vld [vmem:[%s1 + $0xd8] sm:$0xff]
  %v46 = vld [vmem:[%s1 + $0xe0] sm:$0xff]
  %v47 = vld [vmem:[%s1 + $0xe8] sm:$0xff]
  %v48 = vld [vmem:[%s1 + $0xf0] sm:$0xff]
  %v49 = vld [vmem:[%s1 + $0xf8] sm:$0xff]
  %v50 = vld [vmem:[%s1 + $0x100] sm:$0xff]
  %v51 = vld [vmem:[%s1 + $0x108] sm:$0xff]
  %v52 = vld [vmem:[%s1 + $0x110] sm:$0xff]
  %v53 = vld [vmem:[%s1 + $0x118] sm:$0xff]
  %v54 = vld [vmem:[%s1 + $0x120] sm:$0xff]
  %v55 = vld [vmem:[%s1 + $0x128] sm:$0xff]
  %v56 = vld [vmem:[%s1 + $0x130] sm:$0xff]
  %v57 = vld [vmem:[%s1 + $0x138] sm:$0xff]
  %v58 = vld [vmem:[%s1 + $0x140] sm:$0xff]
  %v59 = vld [vmem:[%s1 + $0x148] sm:$0xff]
  %v60 = vld [vmem:[%s1 + $0x150] sm:$0xff]
  %v61 = vld [vmem:[%s1 + $0x158] sm:$0xff]
  %v62 = vld [vmem:[%s1 + $0x160] sm:$0xff]
  %v63 = vld [vmem:[%s1 + $0x168] sm:$0xff]
  %v64 = vld [vmem:[%s1 + $0x170] sm:$0xff]
  %v65 = vld [vmem:[%s1 + $0x178] sm:$0xff]
  %v66 = vld [vmem:[%s2] sm:$0x7]
  %v68 = vperm.slane %v66, 0
  %v69 = vperm.slane %v66, 1
  %v70 = vperm.slane %v66, 2
  %74 = vmatpush.msra.mxu0 %v63
  %75 = vmatpush.msra.mxu0 %v60
  %76 = vmatpush.msra.mxu0 %v57
  %77 = vmatpush.msra.mxu0 %v54
  %78 = vmatpush.msra.mxu0 %v51
  %79 = vmatpush.msra.mxu0 %v48
  %80 = vmatpush.msra.mxu0 %v45
  %81 = vmatpush.msra.mxu0 %v42
  %82 = vmatpush.msra.mxu0 %v39
  %83 = vmatpush.msra.mxu0 %v36
  %84 = vmatpush.msra.mxu0 %v33
  %85 = vmatpush.msra.mxu0 %v30
  %86 = vmatpush.msra.mxu0 %v27
  %87 = vmatpush.msra.mxu0 %v24
  %88 = vmatpush.msra.mxu0 %v21
  %89 = vmatpush.msra.mxu0 %v18
  %90 = vmatmul.f32.gmra.mxu0 %v17
  %v91 = vpop.f32.mrf.mxu0
  %v92 = vadd.f32 %v68, %v91
  %93 = vdwg.mxu0
  %94 = vmatpush.msra.mxu0 %v64
  %95 = vmatpush.msra.mxu0 %v61
  %96 = vmatpush.msra.mxu0 %v58
  %97 = vmatpush.msra.mxu0 %v55
  %98 = vmatpush.msra.mxu0 %v52
  %99 = vmatpush.msra.mxu0 %v49
  %100 = vmatpush.msra.mxu0 %v46
  %101 = vmatpush.msra.mxu0 %v43
  %102 = vmatpush.msra.mxu0 %v40
  %103 = vmatpush.msra.mxu0 %v37
  %104 = vmatpush.msra.mxu0 %v34
  %105 = vmatpush.msra.mxu0 %v31
  %106 = vmatpush.msra.mxu0 %v28
  %107 = vmatpush.msra.mxu0 %v25
  %108 = vmatpush.msra.mxu0 %v22
  %109 = vmatpush.msra.mxu0 %v19
  %110 = vmatmul.f32.gmra.mxu0 %v17
  %v111 = vpop.f32.mrf.mxu0
  %v112 = vadd.f32 %v69, %v111
  %113 = vdwg.mxu0
  %114 = vmatpush.msra.mxu0 %v65
  %115 = vmatpush.msra.mxu0 %v62
  %116 = vmatpush.msra.mxu0 %v59
  %117 = vmatpush.msra.mxu0 %v56
  %118 = vmatpush.msra.mxu0 %v53
  %119 = vmatpush.msra.mxu0 %v50
  %120 = vmatpush.msra.mxu0 %v47
  %121 = vmatpush.msra.mxu0 %v44
  %122 = vmatpush.msra.mxu0 %v41
  %123 = vmatpush.msra.mxu0 %v38
  %124 = vmatpush.msra.mxu0 %v35
  %125 = vmatpush.msra.mxu0 %v32
  %126 = vmatpush.msra.mxu0 %v29
  %127 = vmatpush.msra.mxu0 %v26
  %128 = vmatpush.msra.mxu0 %v23
  %129 = vmatpush.msra.mxu0 %v20
  %130 = vmatmul.f32.gmra.mxu0 %v17
  %v131 = vpop.f32.mrf.mxu0
  %v132 = vadd.f32 %v70, %v131
  %133 = vdwg.mxu0
  %v134 = vmax.f32 %v92, 0.0
  %v135 = vmax.f32 %v112, 0.0
  %v136 = vld [vmem:[%s3] sm:$0xff]
  %v137 = vld [vmem:[%s3 + $0x8] sm:$0xff]
  %v138 = vld [vmem:[%s3 + $0x10] sm:$0xff]
  %v139 = vld [vmem:[%s3 + $0x18] sm:$0xff]
  %v140 = vld [vmem:[%s3 + $0x20] sm:$0xff]
  %v141 = vld [vmem:[%s3 + $0x28] sm:$0xff]
  %v142 = vld [vmem:[%s3 + $0x30] sm:$0xff]
  %v143 = vld [vmem:[%s3 + $0x38] sm:$0xff]
  %v144 = vld [vmem:[%s3 + $0x40] sm:$0xff]
  %v145 = vld [vmem:[%s3 + $0x48] sm:$0xff]
  %v146 = vld [vmem:[%s3 + $0x50] sm:$0xff]
  %v147 = vld [vmem:[%s3 + $0x58] sm:$0xff]
  %v148 = vld [vmem:[%s3 + $0x60] sm:$0xff]
  %v149 = vld [vmem:[%s3 + $0x68] sm:$0xff]
  %v150 = vld [vmem:[%s3 + $0x70] sm:$0xff]
  %v151 = vld [vmem:[%s3 + $0x78] sm:$0xff]
  %v152 = vld [vmem:[%s3 + $0x80] sm:$0xff]
  %v153 = vld [vmem:[%s3 + $0x88] sm:$0xff]
  %v154 = vld [vmem:[%s3 + $0x90] sm:$0xff]
  %v155 = vld [vmem:[%s3 + $0x98] sm:$0xff]
  %v156 = vld [vmem:[%s3 + $0xa0] sm:$0xff]
  %v157 = vld [vmem:[%s3 + $0xa8] sm:$0xff]
  %v158 = vld [vmem:[%s3 + $0xb0] sm:$0xff]
  %v159 = vld [vmem:[%s3 + $0xb8] sm:$0xff]
  %v160 = vld [vmem:[%s3 + $0xc0] sm:$0xff]
  %v161 = vld [vmem:[%s3 + $0xc8] sm:$0xff]
  %v162 = vld [vmem:[%s3 + $0xd0] sm:$0xff]
  %v163 = vld [vmem:[%s3 + $0xd8] sm:$0xff]
  %v164 = vld [vmem:[%s3 + $0xe0] sm:$0xff]
  %v165 = vld [vmem:[%s3 + $0xe8] sm:$0xff]
  %v166 = vld [vmem:[%s3 + $0xf0] sm:$0xff]
  %v167 = vld [vmem:[%s3 + $0xf8] sm:$0xff]
  %168 = vmatpush.msra.mxu0 %v151
  %169 = vmatpush.msra.mxu0 %v150
  %170 = vmatpush.msra.mxu0 %v149
  %171 = vmatpush.msra.mxu0 %v148
  %172 = vmatpush.msra.mxu0 %v147
  %173 = vmatpush.msra.mxu0 %v146
  %174 = vmatpush.msra.mxu0 %v145
  %175 = vmatpush.msra.mxu0 %v144
  %176 = vmatpush.msra.mxu0 %v143
  %177 = vmatpush.msra.mxu0 %v142
  %178 = vmatpush.msra.mxu0 %v141
  %179 = vmatpush.msra.mxu0 %v140
  %180 = vmatpush.msra.mxu0 %v139
  %181 = vmatpush.msra.mxu0 %v138
  %182 = vmatpush.msra.mxu0 %v137
  %183 = vmatpush.msra.mxu0 %v136
  %184 = vmatmul.f32.gmra.mxu0 %v134
  %v185 = vpop.f32.mrf.mxu0
  %v186 = vadd.f32 0.0, %v185
  %187 = vdwg.mxu0
  %188 = vmatpush.msra.mxu0 %v167
  %189 = vmatpush.msra.mxu0 %v166
  %190 = vmatpush.msra.mxu0 %v165
  %191 = vmatpush.msra.mxu0 %v164
  %192 = vmatpush.msra.mxu0 %v163
  %193 = vmatpush.msra.mxu0 %v162
  %194 = vmatpush.msra.mxu0 %v161
  %195 = vmatpush.msra.mxu0 %v160
  %196 = vmatpush.msra.mxu0 %v159
  %197 = vmatpush.msra.mxu0 %v158
  %198 = vmatpush.msra.mxu0 %v157
  %199 = vmatpush.msra.mxu0 %v156
  %200 = vmatpush.msra.mxu0 %v155
  %201 = vmatpush.msra.mxu0 %v154
  %202 = vmatpush.msra.mxu0 %v153
  %203 = vmatpush.msra.mxu0 %v152
  %204 = vmatmul.f32.gmra.mxu0 %v135
  %v205 = vpop.f32.mrf.mxu0
  %v206 = vadd.f32 %v186, %v205
  %207 = vdwg.mxu0
  %v208 = vadd.f32 %v132, %v206
  %vm209 = vcmask 516096
  %210 = vst.msk [vmem:[%s4] sm:$0x1] %vm209, %v208
  // Predicated region
  $region18: #{three_operation_model.1} parent=0 // pred_check
    _
  $region19: #{three_operation_model.1} parent=0 // pred_check_branch
    %212 = sbr.rel (0) target = $region21
  $region20: #{three_operation_model.1} parent=0 // pred_region
    _
  $region21: #{three_operation_model.1} parent=0 // pred_fallthru
    _
  // Predicated region
  $region22: #{three_operation_model.1} parent=0 // pred_check
    _
  $region23: #{three_operation_model.1} parent=0 // pred_check_branch
    %214 = sbr.rel (0) target = $region25
  $region24: #{three_operation_model.1} parent=0 // pred_region
    _
  $region25: #{three_operation_model.1} parent=0 // pred_fallthru
    _

</llo_original>
